<compile_context>
chip_gen: v5e
topology: v5e:2x2
jax: 0.10.0
libtpu: 0.0.40
codegen_flags: <defaults>
</compile_context>

<pallas_src>
import functools

import jax
import jax.numpy as jnp
import numpy as np
from jax import lax
from jax.experimental import pallas as pl
from jax.experimental.pallas import tpu as pltpu

VMEM_LIMIT = 48 * 1024 * 1024   # fits v7x (64 MiB physical) and raises v5e/v6e defaults


def _grid_sizes(n):
    """(n_pad, tm, tk): pad n so legal (8,128)-aligned divisor tiles always exist."""
    n_pad = ((n + 127) // 128) * 128
    tm = 256 if n_pad % 256 == 0 else 128
    tk = next(c for c in (2048, 1024, 512, 256, 128) if n_pad % c == 0)
    return n_pad, tm, tk


# ----------------------------- kernels ------------------------------------- #

def _mask_eye_rowsum_kernel(adj_ref, m1_ref, m2_ref, a_ref, rs_ref, *, tm, tk):
    """A' = adj*mask1*mask2 + I  (bf16 out); rowsum(A') (f32) accumulated over k."""
    i = pl.program_id(0)
    k = pl.program_id(1)

    @pl.when(k == 0)
    def _():
        rs_ref[...] = jnp.zeros_like(rs_ref)

    prod = (adj_ref[...] * m1_ref[...] * m2_ref[...]).astype(jnp.float32)

    row0 = i * tm
    col0 = k * tk
    hits_diag = jnp.logical_and(row0 < col0 + tk, col0 < row0 + tm)

    @pl.when(hits_diag)
    def _():
        rows = lax.broadcasted_iota(jnp.int32, (tm, tk), 0) + row0
        cols = lax.broadcasted_iota(jnp.int32, (tm, tk), 1) + col0
        a = prod + jnp.where(rows == cols, 1.0, 0.0)
        rs_ref[...] += jnp.sum(a, axis=1, keepdims=True)
        a_ref[...] = a.astype(a_ref.dtype)

    @pl.when(jnp.logical_not(hits_diag))
    def _():
        rs_ref[...] += jnp.sum(prod, axis=1, keepdims=True)
        a_ref[...] = prod.astype(a_ref.dtype)


def _gcn_layer_kernel(*refs, fin, apply_relu, apply_dropout, fuse_matvec, fuse_cross):
    """out = [dropout]([relu]( (d ⊙ A'^T (d ⊙ h)) @ W^T )), K-tiled over nodes.

    Optional fusions (all reuse the resident A' tile):
      fuse_matvec: A'^T d via an extra ones column of h (same matmul) and
                   per-tile partials of A' d (summed over i outside).
      fuse_cross : per-row partials of  sum_f u_i * (A'^T u)_i  with u = d ⊙ xs.
    """
    it = iter(refs)
    at_ref = next(it)                                # (tk, tm) bf16 : A'[kblk, iblk]
    h_ref = next(it)                                 # (tk, fin[+1]) bf16
    dcol_ref = next(it)                              # (tk, 1) f32
    drow_ref = next(it)                              # (tm, 1) f32
    wt_ref = next(it)                                # (fin, fout) f32
    drowT_ref = next(it) if fuse_matvec else None    # (1, tm) f32
    xsk_ref = next(it) if fuse_cross else None       # (tk, f0) f32
    xsi_ref = next(it) if fuse_cross else None       # (tm, f0) f32
    drop_ref = next(it) if apply_dropout else None   # (tm, fout) f32
    out_ref = next(it)                               # (tm, fout)
    atd_ref = next(it) if fuse_matvec else None      # (tm, 1) f32
    adp_ref = next(it) if fuse_matvec else None      # (1, tk, 1) f32
    crs_ref = next(it) if fuse_cross else None       # (tm, 1) f32
    acc_ref = next(it)                               # (tm, fin[+1]) f32 scratch

    k = pl.program_id(1)
    nk = pl.num_programs(1)

    @pl.when(k == 0)
    def _():
        acc_ref[...] = jnp.zeros_like(acc_ref)
        if fuse_cross:
            crs_ref[...] = jnp.zeros_like(crs_ref)

    a = at_ref[...]                                                   # (tk, tm) bf16
    dcol = dcol_ref[...]                                              # (tk, 1) f32
    z = (dcol * h_ref[...].astype(jnp.float32)).astype(jnp.bfloat16)  # (tk, fin[+1])
    acc_ref[...] += lax.dot_general(a, z, (((0,), (0,)), ((), ())),
                                    preferred_element_type=jnp.float32)

    if fuse_matvec:
        # A' d partial for this column block (reduced over the i axis in XLA; tiny).
        af = a.astype(jnp.float32)
        adp_ref[...] = jnp.sum(af * drowT_ref[...], axis=1, keepdims=True)[None]

    if fuse_cross:
        uk = (dcol * xsk_ref[...]).astype(jnp.bfloat16)               # (tk, f0)
        t = lax.dot_general(a, uk, (((0,), (0,)), ((), ())),
                            preferred_element_type=jnp.float32)       # (tm, f0)
        ui = drow_ref[...] * xsi_ref[...]                             # (tm, f0) f32
        crs_ref[...] += jnp.sum(ui * t, axis=1, keepdims=True)

    @pl.when(k == nk - 1)
    def _():
        acc = acc_ref[...]
        y = drow_ref[...] * acc[:, :fin]                              # d ⊙ (A'^T (d⊙h))
        y = jnp.dot(y, wt_ref[...], preferred_element_type=jnp.float32)
        if apply_relu:
            y = jnp.maximum(y, 0.0)
        if apply_dropout:
            y = y * drop_ref[...]
        out_ref[...] = y.astype(out_ref.dtype)
        if fuse_matvec:
            atd_ref[...] = acc[:, fin:fin + 1]                        # = (A'^T d)[iblk]


def _smooth_cross_kernel(at_ref, uk_ref, ui_ref, crs_ref):
    """Fallback (layer_num == 1): per-row partials of sum(u * (A'^T u))."""
    @pl.when(pl.program_id(1) == 0)
    def _():
        crs_ref[...] = jnp.zeros_like(crs_ref)

    t = lax.dot_general(at_ref[...], uk_ref[...], (((0,), (0,)), ((), ())),
                        preferred_element_type=jnp.float32)
    crs_ref[...] += jnp.sum(ui_ref[...] * t, axis=1, keepdims=True)


# ----------------------------- wrappers ------------------------------------ #

def masked_adj_plus_eye(adj, mask1, mask2, *, n_pad, tm, tk):
    kernel = functools.partial(_mask_eye_rowsum_kernel, tm=tm, tk=tk)
    return pl.pallas_call(
        kernel,
        grid=(n_pad // tm, n_pad // tk),
        in_specs=[pl.BlockSpec((tm, tk), lambda i, k: (i, k))] * 3,
        out_specs=[pl.BlockSpec((tm, tk), lambda i, k: (i, k)),
                   pl.BlockSpec((tm, 1), lambda i, k: (i, 0))],
        out_shape=[jax.ShapeDtypeStruct((n_pad, n_pad), jnp.bfloat16),
                   jax.ShapeDtypeStruct((n_pad, 1), jnp.float32)],
        compiler_params=pltpu.CompilerParams(
            dimension_semantics=("parallel", "arbitrary"),
            vmem_limit_bytes=VMEM_LIMIT),
    )(adj, mask1, mask2)


def gcn_layer(a_eye, h, d_col, d_row_t, w, *, n_pad, tm, tk, apply_relu,
              drop_scale=None, xs=None, fuse_matvec=False, out_dtype=jnp.bfloat16):
    fout, fin = w.shape
    fh = h.shape[1]
    assert fh == fin + (1 if fuse_matvec else 0)
    apply_dropout = drop_scale is not None
    fuse_cross = xs is not None
    ni, nk = n_pad // tm, n_pad // tk
    wt = jnp.asarray(w, jnp.float32).T                    # (fin, fout)

    in_specs = [
        pl.BlockSpec((tk, tm), lambda i, k: (k, i)),      # A' column block (bf16)
        pl.BlockSpec((tk, fh), lambda i, k: (k, 0)),      # h rows over contraction dim
        pl.BlockSpec((tk, 1), lambda i, k: (k, 0)),       # d over contraction rows
        pl.BlockSpec((tm, 1), lambda i, k: (i, 0)),       # d over output rows
        pl.BlockSpec((fin, fout), lambda i, k: (0, 0)),   # resident weight (f32)
    ]
    args = [a_eye, h, d_col, d_col, wt]
    if fuse_matvec:
        in_specs.append(pl.BlockSpec((1, tm), lambda i, k: (0, i)))
        args.append(d_row_t)
    if fuse_cross:
        f0 = xs.shape[1]
        in_specs += [pl.BlockSpec((tk, f0), lambda i, k: (k, 0)),
                     pl.BlockSpec((tm, f0), lambda i, k: (i, 0))]
        args += [xs, xs]
    if apply_dropout:
        in_specs.append(pl.BlockSpec((tm, fout), lambda i, k: (i, 0)))
        args.append(drop_scale)

    out_specs = [pl.BlockSpec((tm, fout), lambda i, k: (i, 0))]
    out_shape = [jax.ShapeDtypeStruct((n_pad, fout), out_dtype)]
    if fuse_matvec:
        out_specs += [pl.BlockSpec((tm, 1), lambda i, k: (i, 0)),
                      pl.BlockSpec((1, tk, 1), lambda i, k: (i, k, 0))]
        out_shape += [jax.ShapeDtypeStruct((n_pad, 1), jnp.float32),
                      jax.ShapeDtypeStruct((ni, n_pad, 1), jnp.float32)]
    if fuse_cross:
        out_specs.append(pl.BlockSpec((tm, 1), lambda i, k: (i, 0)))
        out_shape.append(jax.ShapeDtypeStruct((n_pad, 1), jnp.float32))

    kernel = functools.partial(_gcn_layer_kernel, fin=fin, apply_relu=apply_relu,
                               apply_dropout=apply_dropout,
                               fuse_matvec=fuse_matvec, fuse_cross=fuse_cross)
    return pl.pallas_call(
        kernel,
        grid=(ni, nk),
        in_specs=in_specs,
        out_specs=out_specs,
        out_shape=out_shape,
        scratch_shapes=[pltpu.VMEM((tm, fh), jnp.float32)],
        compiler_params=pltpu.CompilerParams(
            dimension_semantics=("parallel", "arbitrary"),
            vmem_limit_bytes=VMEM_LIMIT),
    )(*args)


def smooth_cross(a_eye, u_bf16, u_f32, *, n_pad, tm, tk):
    f0 = u_f32.shape[1]
    return pl.pallas_call(
        _smooth_cross_kernel,
        grid=(n_pad // tm, n_pad // tk),
        in_specs=[pl.BlockSpec((tk, tm), lambda i, k: (k, i)),
                  pl.BlockSpec((tk, f0), lambda i, k: (k, 0)),
                  pl.BlockSpec((tm, f0), lambda i, k: (i, 0))],
        out_specs=pl.BlockSpec((tm, 1), lambda i, k: (i, 0)),
        out_shape=jax.ShapeDtypeStruct((n_pad, 1), jnp.float32),
        compiler_params=pltpu.CompilerParams(
            dimension_semantics=("parallel", "arbitrary"),
            vmem_limit_bytes=VMEM_LIMIT),
    )(a_eye, u_bf16, u_f32)


def net_gcn_forward(x, adj, params, *, val_test=False, rng_key=None):
    """Mirrors net_gcn.forward(x, adj, val_test, dw_feature_pert=None)."""
    n = adj.shape[0]
    n_pad, tm, tk = _grid_sizes(n)
    pad = n_pad - n

    def pad2d(m):
        return m if pad == 0 else jnp.pad(m, ((0, pad), (0, pad)))

    # Zero-padding is exactly neutral: padded rows/cols of A' are pure identity,
    # padded h / xs rows are zero, so outputs and the loss are unchanged.
    adj_p = pad2d(adj)
    m1_p = pad2d(params["mask1"])
    m2_p = pad2d(params["mask2"])
    x_p = (x if pad == 0 else jnp.pad(x, ((0, pad), (0, 0)))).astype(jnp.float32)

    # Pass 1: A' = adj*mask1*mask2 + I (bf16) and rowsum(A') (f32).
    a_eye, rowsum = masked_adj_plus_eye(adj_p, m1_p, m2_p, n_pad=n_pad, tm=tm, tk=tk)
    d = jnp.power(rowsum[:, 0], -0.5)
    d = jnp.where(jnp.isinf(d), 0.0, d).astype(jnp.float32)   # (n_pad,)
    d_col = d[:, None]
    d_row = d[None, :]

    if rng_key is None:
        rng_key = jax.random.PRNGKey(0)

    weights = params["weights"]
    layer_num = len(weights)
    ones_col = jnp.ones((n_pad, 1), jnp.bfloat16)

    h = x_p.astype(jnp.bfloat16)
    xs = None
    rowsum_s = None
    cross = None

    for ln, w in enumerate(weights):
        last = ln == layer_num - 1
        drop = None
        if (not last) and (not val_test):
            keep = jax.random.bernoulli(jax.random.fold_in(rng_key, ln), 0.5,
                                        (n_pad, w.shape[0]))
            drop = jnp.where(keep, 2.0, 0.0).astype(jnp.float32)

        fuse_matvec = ln == 0                       # A'^T d and A' d piggyback here
        fuse_cross = (ln == 1) and (xs is not None)  # cross term piggybacks here
        h_in = jnp.concatenate([h, ones_col], axis=1) if fuse_matvec else h

        outs = list(gcn_layer(
            a_eye, h_in, d_col, d_row, w, n_pad=n_pad, tm=tm, tk=tk,
            apply_relu=not last, drop_scale=drop,
            xs=xs if fuse_cross else None, fuse_matvec=fuse_matvec,
            out_dtype=jnp.float32 if last else jnp.bfloat16))
        h = outs.pop(0)

        if fuse_matvec:
            atd = outs.pop(0)[:, 0]                         # A'^T d
            ad = jnp.sum(outs.pop(0), axis=0)[:, 0]         # A' d (sum of partials)
            rowsum_s = 0.5 * (d * atd + d * ad)             # rowsum of (An^T+An)/2
            r_inv = jnp.power(rowsum_s + 0.001, -0.5)
            r_inv = jnp.where(jnp.isinf(r_inv), 0.0, r_inv)
            xs = r_inv[:, None] * x_p                       # (n_pad, f0) f32
        if fuse_cross:
            cross = jnp.sum(outs.pop(0))

    if cross is None:                                       # layer_num == 1 fallback
        u = d_col * xs
        cross = jnp.sum(smooth_cross(a_eye, u.astype(jnp.bfloat16), u,
                                     n_pad=n_pad, tm=tm, tk=tk))

    diag_term = jnp.sum(rowsum_s * jnp.sum(xs * xs, axis=1))
    loss_smooth_feat = diag_term - cross                    # dw_feature_pert is None
    return h[:n], loss_smooth_feat


# ------------------------- pure-JAX f32 reference --------------------------- #

def _ref_forward(x, adj, params):
    n = adj.shape[0]
    a = adj * params["mask1"] * params["mask2"] + jnp.eye(n, dtype=jnp.float32)
    d = jnp.power(a.sum(1), -0.5)
    d = jnp.where(jnp.isinf(d), 0.0, d)
    adj_n = d[:, None] * a.T * d[None, :]
    h = x
    layer_num = len(params["weights"])
    for ln, w in enumerate(params["weights"]):
        h = adj_n @ h @ w.T
        if ln == layer_num - 1:
            break
        h = jnp.maximum(h, 0.0)
    adj_s = (adj_n.T + adj_n) * 0.5
    rowsum = adj_s.sum(1)
    lmat = jnp.diag(rowsum) - adj_s
    r_inv = jnp.power(rowsum + 0.001, -0.5)
    r_inv = jnp.where(jnp.isinf(r_inv), 0.0, r_inv)
    lmat = r_inv[:, None] * lmat * r_inv[None, :]
    loss = jnp.trace(x.T @ lmat @ x)
    return h, loss


# ------------------------------- demo --------------------------------------- #

if __name__ == "__main__":
    key = jax.random.PRNGKey(0)
    n_nodes = 128
    embedding_dim = [32, 16, 8]                 # layer_num = 2

    k_adj, k_x, k_w = jax.random.split(key, 3)

    # random symmetric binary adjacency
    r = jax.random.bernoulli(k_adj, 0.05, (n_nodes, n_nodes)).astype(jnp.float32)
    adj = jnp.clip(r + r.T, 0.0, 1.0)
    x = jax.random.normal(k_x, (n_nodes, embedding_dim[0]), dtype=jnp.float32)

    # generate_adj_mask(adj): 1 where adj != 0 else 0; stored bf16 (exact for 0/1)
    # so pass 1 streams 8N^2 B instead of 12N^2 B.
    mask = jnp.where(adj != 0, 1.0, 0.0).astype(jnp.bfloat16)

    # deterministic Linear weights (bias=False), shape (out, in), U(-1/sqrt(fan_in), ..)
    weights = []
    wkeys = jax.random.split(k_w, len(embedding_dim) - 1)
    for ln in range(len(embedding_dim) - 1):
        fan_in = embedding_dim[ln]
        bound = 1.0 / (fan_in ** 0.5)
        weights.append(jax.random.uniform(
            wkeys[ln], (embedding_dim[ln + 1], fan_in),
            minval=-bound, maxval=bound, dtype=jnp.float32))

    params = {"mask1": mask, "mask2": mask, "weights": weights}

    # deterministic check against a pure-JAX f32 reference (val_test=True: no dropout)
    out_vt, loss_vt = net_gcn_forward(x, adj, params, val_test=True)
    jax.block_until_ready((out_vt, loss_vt))
    ref_out, ref_loss = _ref_forward(x, adj, params)
    np.testing.assert_allclose(np.asarray(out_vt), np.asarray(ref_out),
                               rtol=0.1, atol=0.05)
    np.testing.assert_allclose(float(loss_vt), float(ref_loss), rtol=0.05)

    # training-mode forward (with fused dropout)
    out, loss = net_gcn_forward(x, adj, params, val_test=False,
                                rng_key=jax.random.PRNGKey(1))
    jax.block_until_ready((out, loss))
    assert out.shape == (n_nodes, embedding_dim[-1])
    assert jnp.asarray(loss).shape == ()
    assert bool(jnp.all(jnp.isfinite(out)))
    print("KERNEL_OK")
</pallas_src>

<mosaic_0001>
module attributes {stable_mosaic.version = 11 : i64} {
  func.func @_mask_eye_rowsum_kernel(%arg0: i32, %arg1: i32, %arg2: memref<128x128xf32, #tpu.memory_space<vmem>>, %arg3: memref<128x128xbf16, #tpu.memory_space<vmem>>, %arg4: memref<128x128xbf16, #tpu.memory_space<vmem>>, %arg5: memref<128x128xbf16, #tpu.memory_space<vmem>>, %arg6: memref<128x1xf32, #tpu.memory_space<vmem>>) attributes {dimension_semantics = [#tpu.dimension_semantics<parallel>, #tpu.dimension_semantics<arbitrary>], iteration_bounds = array<i64: 1, 1>, scalar_prefetch = 0 : i64, scratch_operands = 0 : i64, tpu.core_type = #tpu.core_type<tc>, window_params = [{transform_indices = @transform_0, window_bounds = array<i64: 128, 128>}, {transform_indices = @transform_1, window_bounds = array<i64: 128, 128>}, {transform_indices = @transform_2, window_bounds = array<i64: 128, 128>}, {transform_indices = @transform_3, window_bounds = array<i64: 128, 128>}, {transform_indices = @transform_4, window_bounds = array<i64: 128, 1>}]} {
    %c0_i32 = arith.constant 0 : i32
    %0 = arith.cmpi eq, %arg1, %c0_i32 : i32
    %1 = arith.extui %0 : i1 to i32
    %c0_i32_0 = arith.constant 0 : i32
    %2 = arith.cmpi ne, %1, %c0_i32_0 : i32
    scf.if %2 {
      %cst = arith.constant 0.000000e+00 : f32
      %22 = vector.broadcast %cst : f32 to vector<128x1xf32>
      %c0_11 = arith.constant 0 : index
      %c0_12 = arith.constant 0 : index
      %23 = vector.load %arg6[%c0_11, %c0_12] : memref<128x1xf32, #tpu.memory_space<vmem>>, vector<128x1xf32>
      tpu.vector_store %arg6[%c0_11, %c0_12], %22 {strides = array<i32>} : memref<128x1xf32, #tpu.memory_space<vmem>>, vector<128x1xf32>,
    } else {
    }
    %c0 = arith.constant 0 : index
    %c0_1 = arith.constant 0 : index
    %3 = vector.load %arg2[%c0, %c0_1] : memref<128x128xf32, #tpu.memory_space<vmem>>, vector<128x128xf32>
    %c0_2 = arith.constant 0 : index
    %c0_3 = arith.constant 0 : index
    %4 = vector.load %arg3[%c0_2, %c0_3] : memref<128x128xbf16, #tpu.memory_space<vmem>>, vector<128x128xbf16>
    %5 = arith.extf %4 : vector<128x128xbf16> to vector<128x128xf32>
    %6 = arith.mulf %3, %5 : vector<128x128xf32>
    %c0_4 = arith.constant 0 : index
    %c0_5 = arith.constant 0 : index
    %7 = vector.load %arg4[%c0_4, %c0_5] : memref<128x128xbf16, #tpu.memory_space<vmem>>, vector<128x128xbf16>
    %8 = arith.extf %7 : vector<128x128xbf16> to vector<128x128xf32>
    %9 = arith.mulf %6, %8 : vector<128x128xf32>
    %c128_i32 = arith.constant 128 : i32
    %10 = arith.muli %arg0, %c128_i32 : i32
    %c128_i32_6 = arith.constant 128 : i32
    %11 = arith.muli %arg1, %c128_i32_6 : i32
    %c128_i32_7 = arith.constant 128 : i32
    %12 = arith.addi %11, %c128_i32_7 : i32
    %13 = arith.cmpi slt, %10, %12 : i32
    %c128_i32_8 = arith.constant 128 : i32
    %14 = arith.addi %10, %c128_i32_8 : i32
    %15 = arith.cmpi slt, %11, %14 : i32
    %16 = arith.andi %13, %15 : i1
    %17 = arith.extui %16 : i1 to i32
    %c0_i32_9 = arith.constant 0 : i32
    %18 = arith.cmpi ne, %17, %c0_i32_9 : i32
    scf.if %18 {
      %22 = tpu.iota {dimensions = array<i32: 0>} : vector<128x128xi32>
      %23 = vector.broadcast %10 : i32 to vector<128x128xi32>
      %24 = arith.addi %22, %23 : vector<128x128xi32>
      %25 = tpu.iota {dimensions = array<i32: 1>} : vector<128x128xi32>
      %26 = vector.broadcast %11 : i32 to vector<128x128xi32>
      %27 = arith.addi %25, %26 : vector<128x128xi32>
      %28 = arith.cmpi eq, %24, %27 : vector<128x128xi32>
      %cst = arith.constant 1.000000e+00 : f32
      %cst_11 = arith.constant 0.000000e+00 : f32
      %29 = vector.broadcast %cst : f32 to vector<128x128xf32>
      %30 = vector.broadcast %cst_11 : f32 to vector<128x128xf32>
      %31 = arith.select %28, %29, %30 : vector<128x128xi1>, vector<128x128xf32>
      %32 = arith.addf %9, %31 : vector<128x128xf32>
      %c0_12 = arith.constant 0 : index
      %c0_13 = arith.constant 0 : index
      %33 = vector.load %arg6[%c0_12, %c0_13] : memref<128x1xf32, #tpu.memory_space<vmem>>, vector<128x1xf32>
      %cst_14 = arith.constant dense<0.000000e+00> : vector<128xf32>
      %34 = vector.multi_reduction <add>, %32, %cst_14 [1] : vector<128x128xf32> to vector<128xf32>
      %35 = vector.shape_cast %34 : vector<128xf32> to vector<128x1xf32>
      %36 = arith.addf %33, %35 : vector<128x1xf32>
      %c0_15 = arith.constant 0 : index
      %c0_16 = arith.constant 0 : index
      %37 = vector.load %arg6[%c0_15, %c0_16] : memref<128x1xf32, #tpu.memory_space<vmem>>, vector<128x1xf32>
      tpu.vector_store %arg6[%c0_15, %c0_16], %36 {strides = array<i32>} : memref<128x1xf32, #tpu.memory_space<vmem>>, vector<128x1xf32>,
      %38 = arith.truncf %32 : vector<128x128xf32> to vector<128x128xbf16>
      %c0_17 = arith.constant 0 : index
      %c0_18 = arith.constant 0 : index
      %39 = vector.load %arg5[%c0_17, %c0_18] : memref<128x128xbf16, #tpu.memory_space<vmem>>, vector<128x128xbf16>
      tpu.vector_store %arg5[%c0_17, %c0_18], %38 {strides = array<i32>} : memref<128x128xbf16, #tpu.memory_space<vmem>>, vector<128x128xbf16>,
    } else {
    }
    %true = arith.constant true
    %19 = arith.xori %16, %true : i1
    %20 = arith.extui %19 : i1 to i32
    %c0_i32_10 = arith.constant 0 : i32
    %21 = arith.cmpi ne, %20, %c0_i32_10 : i32
    scf.if %21 {
      %c0_11 = arith.constant 0 : index
      %c0_12 = arith.constant 0 : index
      %22 = vector.load %arg6[%c0_11, %c0_12] : memref<128x1xf32, #tpu.memory_space<vmem>>, vector<128x1xf32>
      %cst = arith.constant dense<0.000000e+00> : vector<128xf32>
      %23 = vector.multi_reduction <add>, %9, %cst [1] : vector<128x128xf32> to vector<128xf32>
      %24 = vector.shape_cast %23 : vector<128xf32> to vector<128x1xf32>
      %25 = arith.addf %22, %24 : vector<128x1xf32>
      %c0_13 = arith.constant 0 : index
      %c0_14 = arith.constant 0 : index
      %26 = vector.load %arg6[%c0_13, %c0_14] : memref<128x1xf32, #tpu.memory_space<vmem>>, vector<128x1xf32>
      tpu.vector_store %arg6[%c0_13, %c0_14], %25 {strides = array<i32>} : memref<128x1xf32, #tpu.memory_space<vmem>>, vector<128x1xf32>,
      %27 = arith.truncf %9 : vector<128x128xf32> to vector<128x128xbf16>
      %c0_15 = arith.constant 0 : index
      %c0_16 = arith.constant 0 : index
      %28 = vector.load %arg5[%c0_15, %c0_16] : memref<128x128xbf16, #tpu.memory_space<vmem>>, vector<128x128xbf16>
      tpu.vector_store %arg5[%c0_15, %c0_16], %27 {strides = array<i32>} : memref<128x128xbf16, #tpu.memory_space<vmem>>, vector<128x128xbf16>,
    } else {
    }
    return
  }
  func.func @transform_0(%arg0: i32, %arg1: i32) -> (i32, i32) {
    %c0_i32 = arith.constant 0 : i32
    return %arg0, %arg1 : i32, i32
  }
  func.func @transform_1(%arg0: i32, %arg1: i32) -> (i32, i32) {
    %c0_i32 = arith.constant 0 : i32
    return %arg0, %arg1 : i32, i32
  }
  func.func @transform_2(%arg0: i32, %arg1: i32) -> (i32, i32) {
    %c0_i32 = arith.constant 0 : i32
    return %arg0, %arg1 : i32, i32
  }
  func.func @transform_3(%arg0: i32, %arg1: i32) -> (i32, i32) {
    %c0_i32 = arith.constant 0 : i32
    return %arg0, %arg1 : i32, i32
  }
  func.func @transform_4(%arg0: i32, %arg1: i32) -> (i32, i32) {
    %c0_i32 = arith.constant 0 : i32
    %c0_i32_0 = arith.constant 0 : i32
    return %arg0, %c0_i32 : i32, i32
  }
}

</mosaic_0001>

<llo_original>
// kernel: tpu_custom_call.1
$region0: #{tpu_custom_call.1}
  #allocation0 [shape = 'u32[]', space=smem, size = 0x4, offset = 0x4, fixed_abs, tag = 'smem constant byte address 0x4 - core index']
  #allocation1 [shape = 'u32[72,128]{1,0:T(1,128)}', space=vmem, size = 0x9000, scoped, tag = 'internal scratch']
  %s0 = inlined_call_operand.hbm [shape: f32[128,128], index: 0, kind: input, shape index: {}]
  %s1 = inlined_call_operand.hbm [shape: bf16[128,128], index: 1, kind: input, shape index: {}]
  %s2 = inlined_call_operand.hbm [shape: bf16[128,128], index: 2, kind: input, shape index: {}]
  %s3 = inlined_call_operand.hbm [shape: bf16[128,128], index: 3, kind: output, shape index: {0}]
  %s4 = inlined_call_operand.vmem [shape: f32[128,1], index: 4, kind: output, shape index: {1}]
  %5 = xla_tuple %s3, %s4
  %s6 = sld [smem:[#allocation0]]
  $region54: #{tpu_custom_call.1} parent=0
    _
  %s8 = ssub.s32 1, %s6
  %s9 = scalar_select 0, %s8, %s6
  $region1: #{tpu_custom_call.1} parent=0
    #allocation2 [shape = 'u8[65536]{0}', space=vmem, size = 0x10000, scoped, tag = 'input window, operand 0, single buffered']
    #allocation3 [shape = 's32[1]{0}', space=sflag, size = 0x4, scoped, tag = 'scoped memory for tpu_custom_call.1']
    #allocation4 [shape = 's32[1]{0}', space=sflag, size = 0x4, scoped, tag = 'scoped memory for tpu_custom_call.1']
    #allocation5 [shape = 'u8[32768]{0}', space=vmem, size = 0x8000, scoped, tag = 'input window, operand 1, single buffered']
    #allocation6 [shape = 's32[1]{0}', space=sflag, size = 0x4, scoped, tag = 'scoped memory for tpu_custom_call.1']
    #allocation7 [shape = 'u8[32768]{0}', space=vmem, size = 0x8000, scoped, tag = 'input window, operand 2, single buffered']
    #allocation8 [shape = 'u8[32768]{0}', space=vmem, size = 0x8000, scoped, tag = 'output window, operand 0, single buffered']
    %10 = vsyncpa [#allocation3], 0
    %11 = vsyncpa [#allocation6], 0
    %12 = vsyncpa [#allocation4], 0
    // Predicated region
    $region2: #{tpu_custom_call.1} parent=1 // pred_check
      _
    $region3: #{tpu_custom_call.1} parent=1 // pred_check_branch
      %14 = sbr.rel (0) target = $region5
    $region4: #{tpu_custom_call.1} parent=1 // pred_region
      %16 = vsyncadd [#allocation3], 0
      %s17 = sshll.u32 %s0, 4
      %s18 = int_to_ptr.hbm [resolvable:$true] %s17
      %s19 = sshll.u32 [#allocation2], 4
      %s20 = int_to_ptr.vmem [resolvable:$true] %s19
      %25 = dma.hbm_to_vmem [thread:$0]  %s18, 2048, %s20, [#allocation3], 128, 128, 8
    $region5: #{tpu_custom_call.1} parent=1 // pred_fallthru
      _
    // Predicated region
    $region6: #{tpu_custom_call.1} parent=1 // pred_check
      _
    $region7: #{tpu_custom_call.1} parent=1 // pred_check_branch
      %27 = sbr.rel (0) target = $region9
    $region8: #{tpu_custom_call.1} parent=1 // pred_region
      %29 = vsyncadd [#allocation6], 0
      %s30 = sshll.u32 %s1, 4
      %s31 = int_to_ptr.hbm [resolvable:$true] %s30
      %s32 = sshll.u32 [#allocation5], 4
      %s33 = int_to_ptr.vmem [resolvable:$true] %s32
      %38 = dma.hbm_to_vmem [thread:$0]  %s31, 1024, %s33, [#allocation6], 64, 64, 4
    $region9: #{tpu_custom_call.1} parent=1 // pred_fallthru
      _
    // Predicated region
    $region10: #{tpu_custom_call.1} parent=1 // pred_check
      _
    $region11: #{tpu_custom_call.1} parent=1 // pred_check_branch
      %40 = sbr.rel (0) target = $region13
    $region12: #{tpu_custom_call.1} parent=1 // pred_region
      %42 = vsyncadd [#allocation6], 0
      %s43 = sshll.u32 %s2, 4
      %s44 = int_to_ptr.hbm [resolvable:$true] %s43
      %s45 = sshll.u32 [#allocation7], 4
      %s46 = int_to_ptr.vmem [resolvable:$true] %s45
      %51 = dma.hbm_to_vmem [thread:$0]  %s44, 1024, %s46, [#allocation6], 64, 64, 4
    $region13: #{tpu_custom_call.1} parent=1 // pred_fallthru
      _
    // Predicated region
    $region14: #{tpu_custom_call.1} parent=1 // pred_check
      _
    $region15: #{tpu_custom_call.1} parent=1 // pred_check_branch
      %53 = sbr.rel (0) target = $region17
    $region16: #{tpu_custom_call.1} parent=1 // pred_region
      %55 = dma.done [#allocation3], 2048
    $region17: #{tpu_custom_call.1} parent=1 // pred_fallthru
      _
    // Predicated region
    $region18: #{tpu_custom_call.1} parent=1 // pred_check
      _
    $region19: #{tpu_custom_call.1} parent=1 // pred_check_branch
      %57 = sbr.rel (0) target = $region21
    $region20: #{tpu_custom_call.1} parent=1 // pred_region
      %59 = dma.done [#allocation6], 1024
    $region21: #{tpu_custom_call.1} parent=1 // pred_fallthru
      _
    // Predicated region
    $region22: #{tpu_custom_call.1} parent=1 // pred_check
      _
    $region23: #{tpu_custom_call.1} parent=1 // pred_check_branch
      %61 = sbr.rel (0) target = $region25
    $region24: #{tpu_custom_call.1} parent=1 // pred_region
      %63 = dma.done [#allocation6], 1024
    $region25: #{tpu_custom_call.1} parent=1 // pred_fallthru
      _
    %p64 = scmp.eq.s32.totalorder 0, 0
    // Predicated region
    $region26: #{tpu_custom_call.1} parent=1 // pred_check
      %p65 = pneg %p64
    $region27: #{tpu_custom_call.1} parent=1 // pred_check_branch
      %67 = sbr.rel (%p65) target = $region29
    $region28: #{tpu_custom_call.1} parent=1 // pred_region
      %vm68 = vcmask 7168
      %69 = vst.msk [vmem:[%s4] sm:$0xff] %vm68, 0.0
      %70 = vst.msk [vmem:[%s4 + $0x8] sm:$0xff] %vm68, 0.0
      %71 = vst.msk [vmem:[%s4 + $0x10] sm:$0xff] %vm68, 0.0
      %72 = vst.msk [vmem:[%s4 + $0x18] sm:$0xff] %vm68, 0.0
      %73 = vst.msk [vmem:[%s4 + $0x20] sm:$0xff] %vm68, 0.0
      %74 = vst.msk [vmem:[%s4 + $0x28] sm:$0xff] %vm68, 0.0
      %75 = vst.msk [vmem:[%s4 + $0x30] sm:$0xff] %vm68, 0.0
      %76 = vst.msk [vmem:[%s4 + $0x38] sm:$0xff] %vm68, 0.0
      %77 = vst.msk [vmem:[%s4 + $0x40] sm:$0xff] %vm68, 0.0
      %78 = vst.msk [vmem:[%s4 + $0x48] sm:$0xff] %vm68, 0.0
      %79 = vst.msk [vmem:[%s4 + $0x50] sm:$0xff] %vm68, 0.0
      %80 = vst.msk [vmem:[%s4 + $0x58] sm:$0xff] %vm68, 0.0
      %81 = vst.msk [vmem:[%s4 + $0x60] sm:$0xff] %vm68, 0.0
      %82 = vst.msk [vmem:[%s4 + $0x68] sm:$0xff] %vm68, 0.0
      %83 = vst.msk [vmem:[%s4 + $0x70] sm:$0xff] %vm68, 0.0
      %84 = vst.msk [vmem:[%s4 + $0x78] sm:$0xff] %vm68, 0.0
    $region29: #{tpu_custom_call.1} parent=1 // pred_fallthru
      _
    %v85 = vld [vmem:[#allocation2] sm:$0xff]
    %v86 = vld [vmem:[#allocation2 + $0x8] sm:$0xff]
    %v87 = vld [vmem:[#allocation2 + $0x10] sm:$0xff]
    %v88 = vld [vmem:[#allocation2 + $0x18] sm:$0xff]
    %v89 = vld [vmem:[#allocation2 + $0x20] sm:$0xff]
    %v90 = vld [vmem:[#allocation2 + $0x28] sm:$0xff]
    %v91 = vld [vmem:[#allocation2 + $0x30] sm:$0xff]
    %v92 = vld [vmem:[#allocation2 + $0x38] sm:$0xff]
    %v93 = vld [vmem:[#allocation2 + $0x40] sm:$0xff]
    %v94 = vld [vmem:[#allocation2 + $0x48] sm:$0xff]
    %v95 = vld [vmem:[#allocation2 + $0x50] sm:$0xff]
    %v96 = vld [vmem:[#allocation2 + $0x58] sm:$0xff]
    %v97 = vld [vmem:[#allocation2 + $0x60] sm:$0xff]
    %v98 = vld [vmem:[#allocation2 + $0x68] sm:$0xff]
    %v99 = vld [vmem:[#allocation2 + $0x70] sm:$0xff]
    %v100 = vld [vmem:[#allocation2 + $0x78] sm:$0xff]
    %v101 = vld [vmem:[#allocation5] sm:$0xf]
    %v102 = vld [vmem:[#allocation5 + $0x4] sm:$0xf]
    %v103 = vld [vmem:[#allocation5 + $0x8] sm:$0xf]
    %v104 = vld [vmem:[#allocation5 + $0xc] sm:$0xf]
    %v105 = vld [vmem:[#allocation5 + $0x10] sm:$0xf]
    %v106 = vld [vmem:[#allocation5 + $0x14] sm:$0xf]
    %v107 = vld [vmem:[#allocation5 + $0x18] sm:$0xf]
    %v108 = vld [vmem:[#allocation5 + $0x1c] sm:$0xf]
    %v109 = vld [vmem:[#allocation5 + $0x20] sm:$0xf]
    %v110 = vld [vmem:[#allocation5 + $0x24] sm:$0xf]
    %v111 = vld [vmem:[#allocation5 + $0x28] sm:$0xf]
    %v112 = vld [vmem:[#allocation5 + $0x2c] sm:$0xf]
    %v113 = vld [vmem:[#allocation5 + $0x30] sm:$0xf]
    %v114 = vld [vmem:[#allocation5 + $0x34] sm:$0xf]
    %v115 = vld [vmem:[#allocation5 + $0x38] sm:$0xf]
    %v116 = vld [vmem:[#allocation5 + $0x3c] sm:$0xf]
    %v117 = vunpack.c.l.bf16 %v101
    %v118 = vunpack.c.l.bf16 %v102
    %v119 = vunpack.c.l.bf16 %v103
    %v120 = vunpack.c.l.bf16 %v104
    %v121 = vunpack.c.l.bf16 %v105
    %v122 = vunpack.c.l.bf16 %v106
    %v123 = vunpack.c.l.bf16 %v107
    %v124 = vunpack.c.l.bf16 %v108
    %v125 = vunpack.c.l.bf16 %v109
    %v126 = vunpack.c.l.bf16 %v110
    %v127 = vunpack.c.l.bf16 %v111
    %v128 = vunpack.c.l.bf16 %v112
    %v129 = vunpack.c.l.bf16 %v113
    %v130 = vunpack.c.l.bf16 %v114
    %v131 = vunpack.c.l.bf16 %v115
    %v132 = vunpack.c.l.bf16 %v116
    %v133 = vmul.f32 %v85, %v117
    %v134 = vmul.f32 %v86, %v118
    %v135 = vmul.f32 %v87, %v119
    %v136 = vmul.f32 %v88, %v120
    %v137 = vmul.f32 %v89, %v121
    %v138 = vmul.f32 %v90, %v122
    %v139 = vmul.f32 %v91, %v123
    %v140 = vmul.f32 %v92, %v124
    %v141 = vmul.f32 %v93, %v125
    %v142 = vmul.f32 %v94, %v126
    %v143 = vmul.f32 %v95, %v127
    %v144 = vmul.f32 %v96, %v128
    %v145 = vmul.f32 %v97, %v129
    %v146 = vmul.f32 %v98, %v130
    %v147 = vmul.f32 %v99, %v131
    %v148 = vmul.f32 %v100, %v132
    %v149 = vld [vmem:[#allocation7] sm:$0xf]
    %v150 = vld [vmem:[#allocation7 + $0x4] sm:$0xf]
    %v151 = vld [vmem:[#allocation7 + $0x8] sm:$0xf]
    %v152 = vld [vmem:[#allocation7 + $0xc] sm:$0xf]
    %v153 = vld [vmem:[#allocation7 + $0x10] sm:$0xf]
    %v154 = vld [vmem:[#allocation7 + $0x14] sm:$0xf]
    %v155 = vld [vmem:[#allocation7 + $0x18] sm:$0xf]
    %v156 = vld [vmem:[#allocation7 + $0x1c] sm:$0xf]
    %v157 = vld [vmem:[#allocation7 + $0x20] sm:$0xf]
    %v158 = vld [vmem:[#allocation7 + $0x24] sm:$0xf]
    %v159 = vld [vmem:[#allocation7 + $0x28] sm:$0xf]
    %v160 = vld [vmem:[#allocation7 + $0x2c] sm:$0xf]
    %v161 = vld [vmem:[#allocation7 + $0x30] sm:$0xf]
    %v162 = vld [vmem:[#allocation7 + $0x34] sm:$0xf]
    %v163 = vld [vmem:[#allocation7 + $0x38] sm:$0xf]
    %v164 = vld [vmem:[#allocation7 + $0x3c] sm:$0xf]
    %v165 = vunpack.c.l.bf16 %v149
    %v166 = vunpack.c.l.bf16 %v150
    %v167 = vunpack.c.l.bf16 %v151
    %v168 = vunpack.c.l.bf16 %v152
    %v169 = vunpack.c.l.bf16 %v153
    %v170 = vunpack.c.l.bf16 %v154
    %v171 = vunpack.c.l.bf16 %v155
    %v172 = vunpack.c.l.bf16 %v156
    %v173 = vunpack.c.l.bf16 %v157
    %v174 = vunpack.c.l.bf16 %v158
    %v175 = vunpack.c.l.bf16 %v159
    %v176 = vunpack.c.l.bf16 %v160
    %v177 = vunpack.c.l.bf16 %v161
    %v178 = vunpack.c.l.bf16 %v162
    %v179 = vunpack.c.l.bf16 %v163
    %v180 = vunpack.c.l.bf16 %v164
    %v181 = vmul.f32 %v133, %v165
    %v182 = vmul.f32 %v134, %v166
    %v183 = vmul.f32 %v135, %v167
    %v184 = vmul.f32 %v136, %v168
    %v185 = vmul.f32 %v137, %v169
    %v186 = vmul.f32 %v138, %v170
    %v187 = vmul.f32 %v139, %v171
    %v188 = vmul.f32 %v140, %v172
    %v189 = vmul.f32 %v141, %v173
    %v190 = vmul.f32 %v142, %v174
    %v191 = vmul.f32 %v143, %v175
    %v192 = vmul.f32 %v144, %v176
    %v193 = vmul.f32 %v145, %v177
    %v194 = vmul.f32 %v146, %v178
    %v195 = vmul.f32 %v147, %v179
    %v196 = vmul.f32 %v148, %v180
    %s197 = smul.u32 0, 128
    %s198 = smul.u32 0, 128
    %s199 = sadd.s32 %s198, 128
    %p200 = scmp.lt.s32.totalorder %s197, %s199
    %s201 = sadd.s32 %s197, 128
    %p202 = scmp.lt.s32.totalorder %s198, %s201
    %p203 = pnand %p200, %p202
    %p204 = pneg %p203
    // Predicated region
    $region30: #{tpu_custom_call.1} parent=1 // pred_check
      _
    $region31: #{tpu_custom_call.1} parent=1 // pred_check_branch
      %206 = sbr.rel (%p203) target = $region33
    $region32: #{tpu_custom_call.1} parent=1 // pred_region
      %v207 = vlaneseq
      %v208 = vshrl.u32 %v207, 7
      %v209 = vadd.s32 %v208, 8
      %v210 = vadd.s32 %v208, 16
      %v211 = vadd.s32 %v208, 24
      %v212 = vadd.s32 %v208, 32
      %v213 = vadd.s32 %v208, 40
      %v214 = vadd.s32 %v208, 48
      %v215 = vadd.s32 %v208, 56
      %v216 = vadd.s32 %v208, 64
      %v217 = vadd.s32 %v208, 72
      %v218 = vadd.s32 %v208, 80
      %v219 = vadd.s32 %v208, 88
      %v220 = vadd.s32 %v208, 96
      %v221 = vadd.s32 %v208, 104
      %v222 = vadd.s32 %v208, 112
      %v223 = vadd.s32 %v208, 120
      %v224 = vstv %s197
      %v225 = vadd.s32 %v208, %v224
      %v226 = vadd.s32 %v209, %v224
      %v227 = vadd.s32 %v210, %v224
      %v228 = vadd.s32 %v211, %v224
      %v229 = vadd.s32 %v212, %v224
      %v230 = vadd.s32 %v213, %v224
      %v231 = vadd.s32 %v214, %v224
      %v232 = vadd.s32 %v215, %v224
      %v233 = vadd.s32 %v216, %v224
      %v234 = vadd.s32 %v217, %v224
      %v235 = vadd.s32 %v218, %v224
      %v236 = vadd.s32 %v219, %v224
      %v237 = vadd.s32 %v220, %v224
      %v238 = vadd.s32 %v221, %v224
      %v239 = vadd.s32 %v222, %v224
      %v240 = vadd.s32 %v223, %v224
      %v241 = vlaneseq
      %v242 = vand.u32 %v241, 127
      %v243 = vstv %s198
      %v244 = vadd.s32 %v242, %v243
      %vm245 = vcmp.eq.s32.totalorder %v225, %v244
      %vm246 = vcmp.eq.s32.totalorder %v226, %v244
      %vm247 = vcmp.eq.s32.totalorder %v227, %v244
      %vm248 = vcmp.eq.s32.totalorder %v228, %v244
      %vm249 = vcmp.eq.s32.totalorder %v229, %v244
      %vm250 = vcmp.eq.s32.totalorder %v230, %v244
      %vm251 = vcmp.eq.s32.totalorder %v231, %v244
      %vm252 = vcmp.eq.s32.totalorder %v232, %v244
      %vm253 = vcmp.eq.s32.totalorder %v233, %v244
      %vm254 = vcmp.eq.s32.totalorder %v234, %v244
      %vm255 = vcmp.eq.s32.totalorder %v235, %v244
      %vm256 = vcmp.eq.s32.totalorder %v236, %v244
      %vm257 = vcmp.eq.s32.totalorder %v237, %v244
      %vm258 = vcmp.eq.s32.totalorder %v238, %v244
      %vm259 = vcmp.eq.s32.totalorder %v239, %v244
      %vm260 = vcmp.eq.s32.totalorder %v240, %v244
      %v261 = vsel %vm245, 1.0, 0.0
      %v262 = vsel %vm246, 1.0, 0.0
      %v263 = vsel %vm247, 1.0, 0.0
      %v264 = vsel %vm248, 1.0, 0.0
      %v265 = vsel %vm249, 1.0, 0.0
      %v266 = vsel %vm250, 1.0, 0.0
      %v267 = vsel %vm251, 1.0, 0.0
      %v268 = vsel %vm252, 1.0, 0.0
      %v269 = vsel %vm253, 1.0, 0.0
      %v270 = vsel %vm254, 1.0, 0.0
      %v271 = vsel %vm255, 1.0, 0.0
      %v272 = vsel %vm256, 1.0, 0.0
      %v273 = vsel %vm257, 1.0, 0.0
      %v274 = vsel %vm258, 1.0, 0.0
      %v275 = vsel %vm259, 1.0, 0.0
      %v276 = vsel %vm260, 1.0, 0.0
      %v277 = vadd.f32 %v181, %v261
      %v278 = vadd.f32 %v182, %v262
      %v279 = vadd.f32 %v183, %v263
      %v280 = vadd.f32 %v184, %v264
      %v281 = vadd.f32 %v185, %v265
      %v282 = vadd.f32 %v186, %v266
      %v283 = vadd.f32 %v187, %v267
      %v284 = vadd.f32 %v188, %v268
      %v285 = vadd.f32 %v189, %v269
      %v286 = vadd.f32 %v190, %v270
      %v287 = vadd.f32 %v191, %v271
      %v288 = vadd.f32 %v192, %v272
      %v289 = vadd.f32 %v193, %v273
      %v290 = vadd.f32 %v194, %v274
      %v291 = vadd.f32 %v195, %v275
      %v292 = vadd.f32 %v196, %v276
      %v293 = vld [vmem:[%s4] sm:$0xff]
      %v294 = vld [vmem:[%s4 + $0x8] sm:$0xff]
      %v295 = vld [vmem:[%s4 + $0x10] sm:$0xff]
      %v296 = vld [vmem:[%s4 + $0x18] sm:$0xff]
      %v297 = vld [vmem:[%s4 + $0x20] sm:$0xff]
      %v298 = vld [vmem:[%s4 + $0x28] sm:$0xff]
      %v299 = vld [vmem:[%s4 + $0x30] sm:$0xff]
      %v300 = vld [vmem:[%s4 + $0x38] sm:$0xff]
      %v301 = vld [vmem:[%s4 + $0x40] sm:$0xff]
      %v302 = vld [vmem:[%s4 + $0x48] sm:$0xff]
      %v303 = vld [vmem:[%s4 + $0x50] sm:$0xff]
      %v304 = vld [vmem:[%s4 + $0x58] sm:$0xff]
      %v305 = vld [vmem:[%s4 + $0x60] sm:$0xff]
      %v306 = vld [vmem:[%s4 + $0x68] sm:$0xff]
      %v307 = vld [vmem:[%s4 + $0x70] sm:$0xff]
      %v308 = vld [vmem:[%s4 + $0x78] sm:$0xff]
      %309 = vadd.xlane.f32.xlu0 %v277
      %v310 = vpop.xlane.xlu0 %309
      %311 = vadd.xlane.f32.xlu0 %v278
      %v312 = vpop.xlane.xlu0 %311
      %313 = vadd.xlane.f32.xlu0 %v279
      %v314 = vpop.xlane.xlu0 %313
      %315 = vadd.xlane.f32.xlu0 %v280
      %v316 = vpop.xlane.xlu0 %315
      %317 = vadd.xlane.f32.xlu0 %v281
      %v318 = vpop.xlane.xlu0 %317
      %319 = vadd.xlane.f32.xlu0 %v282
      %v320 = vpop.xlane.xlu0 %319
      %321 = vadd.xlane.f32.xlu0 %v283
      %v322 = vpop.xlane.xlu0 %321
      %323 = vadd.xlane.f32.xlu0 %v284
      %v324 = vpop.xlane.xlu0 %323
      %325 = vadd.xlane.f32.xlu0 %v285
      %v326 = vpop.xlane.xlu0 %325
      %327 = vadd.xlane.f32.xlu0 %v286
      %v328 = vpop.xlane.xlu0 %327
      %329 = vadd.xlane.f32.xlu0 %v287
      %v330 = vpop.xlane.xlu0 %329
      %331 = vadd.xlane.f32.xlu0 %v288
      %v332 = vpop.xlane.xlu0 %331
      %333 = vadd.xlane.f32.xlu0 %v289
      %v334 = vpop.xlane.xlu0 %333
      %335 = vadd.xlane.f32.xlu0 %v290
      %v336 = vpop.xlane.xlu0 %335
      %337 = vadd.xlane.f32.xlu0 %v291
      %v338 = vpop.xlane.xlu0 %337
      %339 = vadd.xlane.f32.xlu0 %v292
      %v340 = vpop.xlane.xlu0 %339
      %v341 = vadd.f32 %v293, %v310
      %v342 = vadd.f32 %v294, %v312
      %v343 = vadd.f32 %v295, %v314
      %v344 = vadd.f32 %v296, %v316
      %v345 = vadd.f32 %v297, %v318
      %v346 = vadd.f32 %v298, %v320
      %v347 = vadd.f32 %v299, %v322
      %v348 = vadd.f32 %v300, %v324
      %v349 = vadd.f32 %v301, %v326
      %v350 = vadd.f32 %v302, %v328
      %v351 = vadd.f32 %v303, %v330
      %v352 = vadd.f32 %v304, %v332
      %v353 = vadd.f32 %v305, %v334
      %v354 = vadd.f32 %v306, %v336
      %v355 = vadd.f32 %v307, %v338
      %v356 = vadd.f32 %v308, %v340
      %vm357 = vcmask 7168
      %358 = vst.msk [vmem:[%s4] sm:$0xff] %vm357, %v341
      %359 = vst.msk [vmem:[%s4 + $0x8] sm:$0xff] %vm357, %v342
      %360 = vst.msk [vmem:[%s4 + $0x10] sm:$0xff] %vm357, %v343
      %361 = vst.msk [vmem:[%s4 + $0x18] sm:$0xff] %vm357, %v344
      %362 = vst.msk [vmem:[%s4 + $0x20] sm:$0xff] %vm357, %v345
      %363 = vst.msk [vmem:[%s4 + $0x28] sm:$0xff] %vm357, %v346
      %364 = vst.msk [vmem:[%s4 + $0x30] sm:$0xff] %vm357, %v347
      %365 = vst.msk [vmem:[%s4 + $0x38] sm:$0xff] %vm357, %v348
      %366 = vst.msk [vmem:[%s4 + $0x40] sm:$0xff] %vm357, %v349
      %367 = vst.msk [vmem:[%s4 + $0x48] sm:$0xff] %vm357, %v350
      %368 = vst.msk [vmem:[%s4 + $0x50] sm:$0xff] %vm357, %v351
      %369 = vst.msk [vmem:[%s4 + $0x58] sm:$0xff] %vm357, %v352
      %370 = vst.msk [vmem:[%s4 + $0x60] sm:$0xff] %vm357, %v353
      %371 = vst.msk [vmem:[%s4 + $0x68] sm:$0xff] %vm357, %v354
      %372 = vst.msk [vmem:[%s4 + $0x70] sm:$0xff] %vm357, %v355
      %373 = vst.msk [vmem:[%s4 + $0x78] sm:$0xff] %vm357, %v356
      %v374 = vpack.c.bf16 %v277, %v277
      %v375 = vpack.c.bf16 %v278, %v278
      %v376 = vpack.c.bf16 %v279, %v279
      %v377 = vpack.c.bf16 %v280, %v280
      %v378 = vpack.c.bf16 %v281, %v281
      %v379 = vpack.c.bf16 %v282, %v282
      %v380 = vpack.c.bf16 %v283, %v283
      %v381 = vpack.c.bf16 %v284, %v284
      %v382 = vpack.c.bf16 %v285, %v285
      %v383 = vpack.c.bf16 %v286, %v286
      %v384 = vpack.c.bf16 %v287, %v287
      %v385 = vpack.c.bf16 %v288, %v288
      %v386 = vpack.c.bf16 %v289, %v289
      %v387 = vpack.c.bf16 %v290, %v290
      %v388 = vpack.c.bf16 %v291, %v291
      %v389 = vpack.c.bf16 %v292, %v292
      %390 = vst [vmem:[#allocation8] sm:$0xf] %v374
      %391 = vst [vmem:[#allocation8 + $0x4] sm:$0xf] %v375
      %392 = vst [vmem:[#allocation8 + $0x8] sm:$0xf] %v376
      %393 = vst [vmem:[#allocation8 + $0xc] sm:$0xf] %v377
      %394 = vst [vmem:[#allocation8 + $0x10] sm:$0xf] %v378
      %395 = vst [vmem:[#allocation8 + $0x14] sm:$0xf] %v379
      %396 = vst [vmem:[#allocation8 + $0x18] sm:$0xf] %v380
      %397 = vst [vmem:[#allocation8 + $0x1c] sm:$0xf] %v381
      %398 = vst [vmem:[#allocation8 + $0x20] sm:$0xf] %v382
      %399 = vst [vmem:[#allocation8 + $0x24] sm:$0xf] %v383
      %400 = vst [vmem:[#allocation8 + $0x28] sm:$0xf] %v384
      %401 = vst [vmem:[#allocation8 + $0x2c] sm:$0xf] %v385
      %402 = vst [vmem:[#allocation8 + $0x30] sm:$0xf] %v386
      %403 = vst [vmem:[#allocation8 + $0x34] sm:$0xf] %v387
      %404 = vst [vmem:[#allocation8 + $0x38] sm:$0xf] %v388
      %405 = vst [vmem:[#allocation8 + $0x3c] sm:$0xf] %v389
    $region33: #{tpu_custom_call.1} parent=1 // pred_fallthru
      _
    %p406 = pneg %p204
    // Predicated region
    $region34: #{tpu_custom_call.1} parent=1 // pred_check
      _
    $region35: #{tpu_custom_call.1} parent=1 // pred_check_branch
      %408 = sbr.rel (%p204) target = $region37
    $region36: #{tpu_custom_call.1} parent=1 // pred_region
      %v409 = vld [vmem:[%s4] sm:$0xff]
      %v410 = vld [vmem:[%s4 + $0x8] sm:$0xff]
      %v411 = vld [vmem:[%s4 + $0x10] sm:$0xff]
      %v412 = vld [vmem:[%s4 + $0x18] sm:$0xff]
      %v413 = vld [vmem:[%s4 + $0x20] sm:$0xff]
      %v414 = vld [vmem:[%s4 + $0x28] sm:$0xff]
      %v415 = vld [vmem:[%s4 + $0x30] sm:$0xff]
      %v416 = vld [vmem:[%s4 + $0x38] sm:$0xff]
      %v417 = vld [vmem:[%s4 + $0x40] sm:$0xff]
      %v418 = vld [vmem:[%s4 + $0x48] sm:$0xff]
      %v419 = vld [vmem:[%s4 + $0x50] sm:$0xff]
      %v420 = vld [vmem:[%s4 + $0x58] sm:$0xff]
      %v421 = vld [vmem:[%s4 + $0x60] sm:$0xff]
      %v422 = vld [vmem:[%s4 + $0x68] sm:$0xff]
      %v423 = vld [vmem:[%s4 + $0x70] sm:$0xff]
      %v424 = vld [vmem:[%s4 + $0x78] sm:$0xff]
      %425 = vadd.xlane.f32.xlu0 %v181
      %v426 = vpop.xlane.xlu0 %425
      %427 = vadd.xlane.f32.xlu0 %v182
      %v428 = vpop.xlane.xlu0 %427
      %429 = vadd.xlane.f32.xlu0 %v183
      %v430 = vpop.xlane.xlu0 %429
      %431 = vadd.xlane.f32.xlu0 %v184
      %v432 = vpop.xlane.xlu0 %431
      %433 = vadd.xlane.f32.xlu0 %v185
      %v434 = vpop.xlane.xlu0 %433
      %435 = vadd.xlane.f32.xlu0 %v186
      %v436 = vpop.xlane.xlu0 %435
      %437 = vadd.xlane.f32.xlu0 %v187
      %v438 = vpop.xlane.xlu0 %437
      %439 = vadd.xlane.f32.xlu0 %v188
      %v440 = vpop.xlane.xlu0 %439
      %441 = vadd.xlane.f32.xlu0 %v189
      %v442 = vpop.xlane.xlu0 %441
      %443 = vadd.xlane.f32.xlu0 %v190
      %v444 = vpop.xlane.xlu0 %443
      %445 = vadd.xlane.f32.xlu0 %v191
      %v446 = vpop.xlane.xlu0 %445
      %447 = vadd.xlane.f32.xlu0 %v192
      %v448 = vpop.xlane.xlu0 %447
      %449 = vadd.xlane.f32.xlu0 %v193
      %v450 = vpop.xlane.xlu0 %449
      %451 = vadd.xlane.f32.xlu0 %v194
      %v452 = vpop.xlane.xlu0 %451
      %453 = vadd.xlane.f32.xlu0 %v195
      %v454 = vpop.xlane.xlu0 %453
      %455 = vadd.xlane.f32.xlu0 %v196
      %v456 = vpop.xlane.xlu0 %455
      %v457 = vadd.f32 %v409, %v426
      %v458 = vadd.f32 %v410, %v428
      %v459 = vadd.f32 %v411, %v430
      %v460 = vadd.f32 %v412, %v432
      %v461 = vadd.f32 %v413, %v434
      %v462 = vadd.f32 %v414, %v436
      %v463 = vadd.f32 %v415, %v438
      %v464 = vadd.f32 %v416, %v440
      %v465 = vadd.f32 %v417, %v442
      %v466 = vadd.f32 %v418, %v444
      %v467 = vadd.f32 %v419, %v446
      %v468 = vadd.f32 %v420, %v448
      %v469 = vadd.f32 %v421, %v450
      %v470 = vadd.f32 %v422, %v452
      %v471 = vadd.f32 %v423, %v454
      %v472 = vadd.f32 %v424, %v456
      %vm473 = vcmask 7168
      %474 = vst.msk [vmem:[%s4] sm:$0xff] %vm473, %v457
      %475 = vst.msk [vmem:[%s4 + $0x8] sm:$0xff] %vm473, %v458
      %476 = vst.msk [vmem:[%s4 + $0x10] sm:$0xff] %vm473, %v459
      %477 = vst.msk [vmem:[%s4 + $0x18] sm:$0xff] %vm473, %v460
      %478 = vst.msk [vmem:[%s4 + $0x20] sm:$0xff] %vm473, %v461
      %479 = vst.msk [vmem:[%s4 + $0x28] sm:$0xff] %vm473, %v462
      %480 = vst.msk [vmem:[%s4 + $0x30] sm:$0xff] %vm473, %v463
      %481 = vst.msk [vmem:[%s4 + $0x38] sm:$0xff] %vm473, %v464
      %482 = vst.msk [vmem:[%s4 + $0x40] sm:$0xff] %vm473, %v465
      %483 = vst.msk [vmem:[%s4 + $0x48] sm:$0xff] %vm473, %v466
      %484 = vst.msk [vmem:[%s4 + $0x50] sm:$0xff] %vm473, %v467
      %485 = vst.msk [vmem:[%s4 + $0x58] sm:$0xff] %vm473, %v468
      %486 = vst.msk [vmem:[%s4 + $0x60] sm:$0xff] %vm473, %v469
      %487 = vst.msk [vmem:[%s4 + $0x68] sm:$0xff] %vm473, %v470
      %488 = vst.msk [vmem:[%s4 + $0x70] sm:$0xff] %vm473, %v471
      %489 = vst.msk [vmem:[%s4 + $0x78] sm:$0xff] %vm473, %v472
      %v490 = vpack.c.bf16 %v181, %v181
      %v491 = vpack.c.bf16 %v182, %v182
      %v492 = vpack.c.bf16 %v183, %v183
      %v493 = vpack.c.bf16 %v184, %v184
      %v494 = vpack.c.bf16 %v185, %v185
      %v495 = vpack.c.bf16 %v186, %v186
      %v496 = vpack.c.bf16 %v187, %v187
      %v497 = vpack.c.bf16 %v188, %v188
      %v498 = vpack.c.bf16 %v189, %v189
      %v499 = vpack.c.bf16 %v190, %v190
      %v500 = vpack.c.bf16 %v191, %v191
      %v501 = vpack.c.bf16 %v192, %v192
      %v502 = vpack.c.bf16 %v193, %v193
      %v503 = vpack.c.bf16 %v194, %v194
      %v504 = vpack.c.bf16 %v195, %v195
      %v505 = vpack.c.bf16 %v196, %v196
      %506 = vst [vmem:[#allocation8] sm:$0xf] %v490
      %507 = vst [vmem:[#allocation8 + $0x4] sm:$0xf] %v491
      %508 = vst [vmem:[#allocation8 + $0x8] sm:$0xf] %v492
      %509 = vst [vmem:[#allocation8 + $0xc] sm:$0xf] %v493
      %510 = vst [vmem:[#allocation8 + $0x10] sm:$0xf] %v494
      %511 = vst [vmem:[#allocation8 + $0x14] sm:$0xf] %v495
      %512 = vst [vmem:[#allocation8 + $0x18] sm:$0xf] %v496
      %513 = vst [vmem:[#allocation8 + $0x1c] sm:$0xf] %v497
      %514 = vst [vmem:[#allocation8 + $0x20] sm:$0xf] %v498
      %515 = vst [vmem:[#allocation8 + $0x24] sm:$0xf] %v499
      %516 = vst [vmem:[#allocation8 + $0x28] sm:$0xf] %v500
      %517 = vst [vmem:[#allocation8 + $0x2c] sm:$0xf] %v501
      %518 = vst [vmem:[#allocation8 + $0x30] sm:$0xf] %v502
      %519 = vst [vmem:[#allocation8 + $0x34] sm:$0xf] %v503
      %520 = vst [vmem:[#allocation8 + $0x38] sm:$0xf] %v504
      %521 = vst [vmem:[#allocation8 + $0x3c] sm:$0xf] %v505
    $region37: #{tpu_custom_call.1} parent=1 // pred_fallthru
      _
    // Predicated region
    $region38: #{tpu_custom_call.1} parent=1 // pred_check
      _
    $region39: #{tpu_custom_call.1} parent=1 // pred_check_branch
      %523 = sbr.rel (0) target = $region41
    $region40: #{tpu_custom_call.1} parent=1 // pred_region
      %525 = vsyncadd [#allocation4], 0
      %s526 = sshll.u32 [#allocation8], 4
      %s527 = int_to_ptr.vmem [resolvable:$true] %s526
      %s528 = sshll.u32 %s3, 4
      %s529 = int_to_ptr.hbm [resolvable:$true] %s528
      %534 = dma.vmem_to_hbm [thread:$0]  %s527, 1024, %s529, [#allocation4], 64, 64, 4
    $region41: #{tpu_custom_call.1} parent=1 // pred_fallthru
      _
    // Predicated region
    $region42: #{tpu_custom_call.1} parent=1 // pred_check
      _
    $region43: #{tpu_custom_call.1} parent=1 // pred_check_branch
      %536 = sbr.rel (0) target = $region45
    $region44: #{tpu_custom_call.1} parent=1 // pred_region
      _
    $region45: #{tpu_custom_call.1} parent=1 // pred_fallthru
      _
    // Predicated region
    $region46: #{tpu_custom_call.1} parent=1 // pred_check
      _
    $region47: #{tpu_custom_call.1} parent=1 // pred_check_branch
      %538 = sbr.rel (0) target = $region49
    $region48: #{tpu_custom_call.1} parent=1 // pred_region
      %540 = dma.done [#allocation4], 1024
    $region49: #{tpu_custom_call.1} parent=1 // pred_fallthru
      _
    // Predicated region
    $region50: #{tpu_custom_call.1} parent=1 // pred_check
      _
    $region51: #{tpu_custom_call.1} parent=1 // pred_check_branch
      %542 = sbr.rel (0) target = $region53
    $region52: #{tpu_custom_call.1} parent=1 // pred_region
      _
    $region53: #{tpu_custom_call.1} parent=1 // pred_fallthru
      _
    %543 = vsyncpa [#allocation3], 1
    %544 = vsyncpa [#allocation6], 1
    %545 = vsyncpa [#allocation4], 1

</llo_original>
